<compile_context>
chip_gen: v6e
topology: v6e:2x2x1
jax: 0.10.0
libtpu: 0.0.40
codegen_flags: <defaults>
</compile_context>

<pallas_src>
import jax
import jax.numpy as jnp
from jax.experimental import pallas as pl
from jax.experimental.pallas import tpu as pltpu

LEVELS = (1, 2, 5)
TOTAL_BINS = sum(LEVELS)  # 8
LANE = 128
MAX_TILE_R = 16384


def _tpp_kernel(xh_ref, o_ref):
    # xh_ref: (W, TILE_R)          -- H already reduced in XLA; rows (N*C) on lanes.
    # o_ref:  (TOTAL_BINS, TILE_R) -- lane-dense output, bins on sublanes.
    xh = xh_ref[...]
    w = xh.shape[0]

    # level-2 bins (reused to derive the level-1 bin with one extra VPU max)
    bw2 = w // 2
    b2_0 = jnp.max(xh[0 * bw2:1 * bw2, :], axis=0)   # (TILE_R,)
    b2_1 = jnp.max(xh[1 * bw2:2 * bw2, :], axis=0)
    o_ref[0, :] = jnp.maximum(b2_0, b2_1)            # level-1 bin
    o_ref[1, :] = b2_0
    o_ref[2, :] = b2_1

    # level-5 bins: direct full-lane-row stores (no narrow / concatenated stores)
    bw5 = w // 5
    for i in range(5):
        o_ref[3 + i, :] = jnp.max(xh[i * bw5:(i + 1) * bw5, :], axis=0)


def _round_up(v, m):
    return -(-v // m) * m


def _choose_tile_r(r, w, budget_bytes=24 << 20):
    """Lane-tile size along the folded row axis R = N*C."""
    # Per-lane f32 bytes: sublane-padded W-input + TOTAL_BINS-output, double-buffered.
    w_pad = _round_up(w, 8)
    per_lane = (w_pad + TOTAL_BINS) * 4 * 2
    tile_r = max(LANE, (budget_bytes // per_lane) // LANE * LANE)
    tile_r = min(tile_r, MAX_TILE_R)
    # No point making the tile (much) larger than R itself.
    tile_r = min(tile_r, max(LANE, _round_up(r, LANE)))
    # v7x megacore: guarantee >= 2 grid steps so both TensorCores get R tiles
    # (measured-neutral on single-TC v5e/v6e).
    if r >= 2 * LANE:
        tile_r = min(tile_r, _round_up(-(-r // 2), LANE))
    return tile_r


def temporal_pyramid_pool(x):
    """x: (N, C, H, W) float32 -> (N, C * sum(LEVELS)), PyTorch TPP flatten order."""
    n, c, h, w = x.shape
    for lvl in LEVELS:
        assert w % lvl == 0, "example requires W divisible by every pyramid level"
    r = n * c

    # Hoist the H reduction into XLA on the native layout, then relayout only the
    # (R, W) result (1/H of the bytes) into lane-dense (W, R) for the kernel.
    xh = jnp.max(x, axis=2).reshape(r, w)       # (R, W)
    xh = xh.T                                   # (W, R): rows on lanes, W on sublanes

    r_in = r
    if r < LANE:                                # tiny inputs: pad to one lane tile (KiB-scale)
        xh = jnp.pad(xh, ((0, 0), (0, LANE - r)))
        r_in = LANE
    # For r >= LANE there is NO pad: the ragged last block is served by Pallas
    # (overrun lanes undefined on load, dropped on store) and sliced off below.

    tile_r = _choose_tile_r(r_in, w)
    grid_r = -(-r_in // tile_r)

    pooled = pl.pallas_call(
        _tpp_kernel,
        out_shape=jax.ShapeDtypeStruct((TOTAL_BINS, r_in), x.dtype),
        grid_spec=pltpu.PrefetchScalarGridSpec(
            num_scalar_prefetch=0,
            grid=(grid_r,),
            in_specs=[pl.BlockSpec((w, tile_r), lambda i: (0, i))],
            out_specs=pl.BlockSpec((TOTAL_BINS, tile_r), lambda i: (0, i)),
        ),
        compiler_params=pltpu.CompilerParams(
            dimension_semantics=("parallel",),  # v7x: split R tiles across both TCs
            vmem_limit_bytes=32 << 20,          # > v5e's 16 MiB default; tiles are ~4 MiB max
        ),
        cost_estimate=pl.CostEstimate(          # purely bandwidth-bound
            flops=int(r_in * (w + TOTAL_BINS)),
            transcendentals=0,
            bytes_accessed=int(r_in * (w + TOTAL_BINS) * 4),
        ),
    )(xh)                                       # (TOTAL_BINS, r_in)

    pooled = pooled[:, :r]                      # drop padded / overrun lanes
    pooled = pooled.T.reshape(n, c, TOTAL_BINS)  # (N, C, 8), bins level-major

    # Reorder to PyTorch's cat([pool_lvl(x).view(N, -1) for lvl in levels], dim=1)
    parts, j = [], 0
    for lvl in LEVELS:
        parts.append(pooled[:, :, j:j + lvl].reshape(n, c * lvl))  # channel-major, bin-minor
        j += lvl
    return jnp.concatenate(parts, axis=1)       # (N, C * 8)


def phoscnet_forward(x):
    # self.conv = nn.Sequential()  -> identity
    # self.phos = nn.Sequential()  -> identity
    # self.phoc = nn.Sequential()  -> identity
    feat = temporal_pyramid_pool(x)
    return {"phos": feat, "phoc": feat}


def _reference_tpp(x):
    # pure-JAX reference with identical semantics
    n, c, h, w = x.shape
    xh = jnp.max(x, axis=2)  # (N, C, W)
    parts = []
    for lvl in LEVELS:
        bw = w // lvl
        bins = [jnp.max(xh[:, :, b * bw:(b + 1) * bw], axis=2, keepdims=True)
                for b in range(lvl)]
        parts.append(jnp.concatenate(bins, axis=2).reshape(n, c * lvl))
    return jnp.concatenate(parts, axis=1)


if __name__ == "__main__":
    key = jax.random.PRNGKey(0)

    # small NCHW conv-feature-like input; W divisible by lcm(1,2,5)=10
    N, C, H, W = 2, 4, 8, 20
    x = jax.random.normal(key, (N, C, H, W), dtype=jnp.float32)

    out = phoscnet_forward(x)
    jax.block_until_ready(out)

    ref = _reference_tpp(x)
    assert out["phos"].shape == (N, C * TOTAL_BINS)
    assert out["phoc"].shape == (N, C * TOTAL_BINS)
    assert jnp.allclose(out["phos"], ref, atol=1e-6)
    assert jnp.allclose(out["phoc"], ref, atol=1e-6)

    # second check: R not a multiple of the tile -> multi-step grid + ragged
    # (no-pad) last block, exercising the removed-jnp.pad path.
    N2, C2 = 2, 136                               # R = 272 -> two 256-lane tiles
    x2 = jax.random.normal(jax.random.PRNGKey(1), (N2, C2, H, W), dtype=jnp.float32)
    out2 = phoscnet_forward(x2)
    jax.block_until_ready(out2)
    assert jnp.allclose(out2["phos"], _reference_tpp(x2), atol=1e-6)

    print("KERNEL_OK")
</pallas_src>

<mosaic_0001>
module attributes {stable_mosaic.version = 11 : i64} {
  func.func @_tpp_kernel(%arg0: i32, %arg1: memref<20x128xf32, #tpu.memory_space<vmem>>, %arg2: memref<8x128xf32, #tpu.memory_space<vmem>>) attributes {dimension_semantics = [#tpu.dimension_semantics<parallel>], iteration_bounds = array<i64: 1>, scalar_prefetch = 0 : i64, scratch_operands = 0 : i64, tpu.core_type = #tpu.core_type<tc>, window_params = [{transform_indices = @transform_0, window_bounds = array<i64: 20, 128>}, {transform_indices = @transform_1, window_bounds = array<i64: 8, 128>}]} {
    %c0 = arith.constant 0 : index
    %c0_0 = arith.constant 0 : index
    %0 = vector.load %arg1[%c0, %c0_0] : memref<20x128xf32, #tpu.memory_space<vmem>>, vector<20x128xf32>
    %1 = vector.extract_strided_slice %0 {offsets = [0, 0], sizes = [10, 128], strides = [1, 1]} : vector<20x128xf32> to vector<10x128xf32>
    %cst = arith.constant dense<0xFF800000> : vector<128xf32>
    %2 = vector.multi_reduction <maximumf>, %1, %cst [0] : vector<10x128xf32> to vector<128xf32>
    %3 = vector.extract_strided_slice %0 {offsets = [10, 0], sizes = [10, 128], strides = [1, 1]} : vector<20x128xf32> to vector<10x128xf32>
    %cst_1 = arith.constant dense<0xFF800000> : vector<128xf32>
    %4 = vector.multi_reduction <maximumf>, %3, %cst_1 [0] : vector<10x128xf32> to vector<128xf32>
    %5 = arith.maximumf %2, %4 : vector<128xf32>
    %c0_2 = arith.constant 0 : index
    %c0_3 = arith.constant 0 : index
    %6 = vector.load %arg2[%c0_2, %c0_3] : memref<8x128xf32, #tpu.memory_space<vmem>>, vector<1x128xf32>
    %7 = vector.shape_cast %6 : vector<1x128xf32> to vector<128xf32>
    %8 = vector.shape_cast %5 : vector<128xf32> to vector<1x128xf32>
    tpu.vector_store %arg2[%c0_2, %c0_3], %8 {strides = array<i32>} : memref<8x128xf32, #tpu.memory_space<vmem>>, vector<1x128xf32>,
    %c1 = arith.constant 1 : index
    %c0_4 = arith.constant 0 : index
    %9 = vector.load %arg2[%c1, %c0_4] : memref<8x128xf32, #tpu.memory_space<vmem>>, vector<1x128xf32>
    %10 = vector.shape_cast %9 : vector<1x128xf32> to vector<128xf32>
    %11 = vector.shape_cast %2 : vector<128xf32> to vector<1x128xf32>
    tpu.vector_store %arg2[%c1, %c0_4], %11 {strides = array<i32>} : memref<8x128xf32, #tpu.memory_space<vmem>>, vector<1x128xf32>,
    %c2 = arith.constant 2 : index
    %c0_5 = arith.constant 0 : index
    %12 = vector.load %arg2[%c2, %c0_5] : memref<8x128xf32, #tpu.memory_space<vmem>>, vector<1x128xf32>
    %13 = vector.shape_cast %12 : vector<1x128xf32> to vector<128xf32>
    %14 = vector.shape_cast %4 : vector<128xf32> to vector<1x128xf32>
    tpu.vector_store %arg2[%c2, %c0_5], %14 {strides = array<i32>} : memref<8x128xf32, #tpu.memory_space<vmem>>, vector<1x128xf32>,
    %15 = vector.extract_strided_slice %0 {offsets = [0, 0], sizes = [4, 128], strides = [1, 1]} : vector<20x128xf32> to vector<4x128xf32>
    %cst_6 = arith.constant dense<0xFF800000> : vector<128xf32>
    %16 = vector.multi_reduction <maximumf>, %15, %cst_6 [0] : vector<4x128xf32> to vector<128xf32>
    %c3 = arith.constant 3 : index
    %c0_7 = arith.constant 0 : index
    %17 = vector.load %arg2[%c3, %c0_7] : memref<8x128xf32, #tpu.memory_space<vmem>>, vector<1x128xf32>
    %18 = vector.shape_cast %17 : vector<1x128xf32> to vector<128xf32>
    %19 = vector.shape_cast %16 : vector<128xf32> to vector<1x128xf32>
    tpu.vector_store %arg2[%c3, %c0_7], %19 {strides = array<i32>} : memref<8x128xf32, #tpu.memory_space<vmem>>, vector<1x128xf32>,
    %20 = vector.extract_strided_slice %0 {offsets = [4, 0], sizes = [4, 128], strides = [1, 1]} : vector<20x128xf32> to vector<4x128xf32>
    %cst_8 = arith.constant dense<0xFF800000> : vector<128xf32>
    %21 = vector.multi_reduction <maximumf>, %20, %cst_8 [0] : vector<4x128xf32> to vector<128xf32>
    %c4 = arith.constant 4 : index
    %c0_9 = arith.constant 0 : index
    %22 = vector.load %arg2[%c4, %c0_9] : memref<8x128xf32, #tpu.memory_space<vmem>>, vector<1x128xf32>
    %23 = vector.shape_cast %22 : vector<1x128xf32> to vector<128xf32>
    %24 = vector.shape_cast %21 : vector<128xf32> to vector<1x128xf32>
    tpu.vector_store %arg2[%c4, %c0_9], %24 {strides = array<i32>} : memref<8x128xf32, #tpu.memory_space<vmem>>, vector<1x128xf32>,
    %25 = vector.extract_strided_slice %0 {offsets = [8, 0], sizes = [4, 128], strides = [1, 1]} : vector<20x128xf32> to vector<4x128xf32>
    %cst_10 = arith.constant dense<0xFF800000> : vector<128xf32>
    %26 = vector.multi_reduction <maximumf>, %25, %cst_10 [0] : vector<4x128xf32> to vector<128xf32>
    %c5 = arith.constant 5 : index
    %c0_11 = arith.constant 0 : index
    %27 = vector.load %arg2[%c5, %c0_11] : memref<8x128xf32, #tpu.memory_space<vmem>>, vector<1x128xf32>
    %28 = vector.shape_cast %27 : vector<1x128xf32> to vector<128xf32>
    %29 = vector.shape_cast %26 : vector<128xf32> to vector<1x128xf32>
    tpu.vector_store %arg2[%c5, %c0_11], %29 {strides = array<i32>} : memref<8x128xf32, #tpu.memory_space<vmem>>, vector<1x128xf32>,
    %30 = vector.extract_strided_slice %0 {offsets = [12, 0], sizes = [4, 128], strides = [1, 1]} : vector<20x128xf32> to vector<4x128xf32>
    %cst_12 = arith.constant dense<0xFF800000> : vector<128xf32>
    %31 = vector.multi_reduction <maximumf>, %30, %cst_12 [0] : vector<4x128xf32> to vector<128xf32>
    %c6 = arith.constant 6 : index
    %c0_13 = arith.constant 0 : index
    %32 = vector.load %arg2[%c6, %c0_13] : memref<8x128xf32, #tpu.memory_space<vmem>>, vector<1x128xf32>
    %33 = vector.shape_cast %32 : vector<1x128xf32> to vector<128xf32>
    %34 = vector.shape_cast %31 : vector<128xf32> to vector<1x128xf32>
    tpu.vector_store %arg2[%c6, %c0_13], %34 {strides = array<i32>} : memref<8x128xf32, #tpu.memory_space<vmem>>, vector<1x128xf32>,
    %35 = vector.extract_strided_slice %0 {offsets = [16, 0], sizes = [4, 128], strides = [1, 1]} : vector<20x128xf32> to vector<4x128xf32>
    %cst_14 = arith.constant dense<0xFF800000> : vector<128xf32>
    %36 = vector.multi_reduction <maximumf>, %35, %cst_14 [0] : vector<4x128xf32> to vector<128xf32>
    %c7 = arith.constant 7 : index
    %c0_15 = arith.constant 0 : index
    %37 = vector.load %arg2[%c7, %c0_15] : memref<8x128xf32, #tpu.memory_space<vmem>>, vector<1x128xf32>
    %38 = vector.shape_cast %37 : vector<1x128xf32> to vector<128xf32>
    %39 = vector.shape_cast %36 : vector<128xf32> to vector<1x128xf32>
    tpu.vector_store %arg2[%c7, %c0_15], %39 {strides = array<i32>} : memref<8x128xf32, #tpu.memory_space<vmem>>, vector<1x128xf32>,
    return
  }
  func.func @transform_0(%arg0: i32) -> (i32, i32) {
    %c0_i32 = arith.constant 0 : i32
    %c0_i32_0 = arith.constant 0 : i32
    return %c0_i32, %arg0 : i32, i32
  }
  func.func @transform_1(%arg0: i32) -> (i32, i32) {
    %c0_i32 = arith.constant 0 : i32
    %c0_i32_0 = arith.constant 0 : i32
    return %c0_i32, %arg0 : i32, i32
  }
}

</mosaic_0001>

<llo_original>
// kernel: tpu_custom_call.1
$region0: #{tpu_custom_call.1}
  #allocation0 [shape = 'u32[]', space=smem, size = 0x4, offset = 0x4, fixed_abs, tag = 'smem constant byte address 0x4 - core index']
  #allocation1 [shape = 'u32[144,128]{1,0:T(1,128)}', space=vmem, size = 0x12000, scoped, tag = 'internal scratch']
  %s0 = inlined_call_operand.hbm [shape: f32[20,128], index: 0, kind: input, shape index: {}]
  %s1 = inlined_call_operand.hbm [shape: f32[8,128], index: 1, kind: output, shape index: {}]
  %s2 = sld [smem:[#allocation0]]
  $region18: #{tpu_custom_call.1} parent=0
    _
  %s4 = ssub.s32 1, %s2
  %s5 = scalar_select 0, %s4, %s2
  $region1: #{tpu_custom_call.1} parent=0
    #allocation2 [shape = 'u8[12288]{0}', space=vmem, size = 0x3000, scoped, tag = 'input window, operand 0, single buffered']
    #allocation3 [shape = 's32[1]{0}', space=sflag, size = 0x4, scoped, tag = 'scoped memory for tpu_custom_call.1']
    #allocation4 [shape = 's32[1]{0}', space=sflag, size = 0x4, scoped, tag = 'scoped memory for tpu_custom_call.1']
    #allocation5 [shape = 'u8[4096]{0}', space=vmem, size = 0x1000, scoped, tag = 'output window, operand 0, single buffered']
    %6 = vsyncpa [#allocation3], 0
    %7 = vsyncpa [#allocation4], 0
    // Predicated region
    $region2: #{tpu_custom_call.1} parent=1 // pred_check
      _
    $region3: #{tpu_custom_call.1} parent=1 // pred_check_branch
      %9 = sbr.rel (0) target = $region5
    $region4: #{tpu_custom_call.1} parent=1 // pred_region
      %s11 = ssub.s32 384, 384
      %12 = vsyncadd [#allocation3], %s11
      %s13 = sshll.u32 [#allocation2], 4
      %s14 = int_to_ptr.vmem [resolvable:$true] %s13
      %19 = dma.hbm_to_vmem [thread:$0]  %s0, 384, %s14, [#allocation3], 128, 128, 8
    $region5: #{tpu_custom_call.1} parent=1 // pred_fallthru
      _
    // Predicated region
    $region6: #{tpu_custom_call.1} parent=1 // pred_check
      _
    $region7: #{tpu_custom_call.1} parent=1 // pred_check_branch
      %21 = sbr.rel (0) target = $region9
    $region8: #{tpu_custom_call.1} parent=1 // pred_region
      %22 = dma.done [#allocation3], 384
    $region9: #{tpu_custom_call.1} parent=1 // pred_fallthru
      _
    %v23 = vld [vmem:[#allocation2] sm:$0xff]
    %v24 = vld [vmem:[#allocation2 + $0x8] sm:$0xff]
    %v25 = vld [vmem:[#allocation2 + $0x10] sm:$0xf]
    %vm26 = vcmask 1041408
    %v27 = vsel %vm26, %v24, -inf
    %v28 = vmax.f32 %v23, %v27
    %v29 = vrot.slane %v28, 4
    %v30 = vmax.f32 %v28, %v29
    %v31 = vrot.slane %v30, 2
    %v32 = vmax.f32 %v30, %v31
    %v33 = vrot.slane %v32, 1
    %v34 = vmax.f32 %v32, %v33
    %vm35 = vcmask 1047554
    %v36 = vsel %vm35, %v24, -inf
    %vm37 = vcmask 1043456
    %v38 = vsel %vm37, %v25, -inf
    %v39 = vmax.f32 %v36, %v38
    %v40 = vrot.slane %v39, 4
    %v41 = vmax.f32 %v39, %v40
    %v42 = vrot.slane %v41, 2
    %v43 = vmax.f32 %v41, %v42
    %v44 = vrot.slane %v43, 1
    %v45 = vmax.f32 %v43, %v44
    %v46 = vmax.f32 %v34, %v45
    %47 = vst [vmem:[#allocation5] sm:$0x1] %v46
    %48 = vst [vmem:[#allocation5 + $0x1] sm:$0x1] %v34
    %49 = vst [vmem:[#allocation5 + $0x2] sm:$0x1] %v45
    %v50 = vsel %vm37, %v23, -inf
    %v51 = vrot.slane %v50, 4
    %v52 = vmax.f32 %v50, %v51
    %v53 = vrot.slane %v52, 2
    %v54 = vmax.f32 %v52, %v53
    %v55 = vrot.slane %v54, 1
    %v56 = vmax.f32 %v54, %v55
    %57 = vst [vmem:[#allocation5 + $0x3] sm:$0x1] %v56
    %vm58 = vcmask 1047556
    %v59 = vsel %vm58, %v23, -inf
    %v60 = vrot.slane %v59, 4
    %v61 = vmax.f32 %v59, %v60
    %v62 = vrot.slane %v61, 2
    %v63 = vmax.f32 %v61, %v62
    %v64 = vrot.slane %v63, 1
    %v65 = vmax.f32 %v63, %v64
    %66 = vst [vmem:[#allocation5 + $0x4] sm:$0x1] %v65
    %v67 = vsel %vm37, %v24, -inf
    %v68 = vrot.slane %v67, 4
    %v69 = vmax.f32 %v67, %v68
    %v70 = vrot.slane %v69, 2
    %v71 = vmax.f32 %v69, %v70
    %v72 = vrot.slane %v71, 1
    %v73 = vmax.f32 %v71, %v72
    %74 = vst [vmem:[#allocation5 + $0x5] sm:$0x1] %v73
    %v75 = vsel %vm58, %v24, -inf
    %v76 = vrot.slane %v75, 4
    %v77 = vmax.f32 %v75, %v76
    %v78 = vrot.slane %v77, 2
    %v79 = vmax.f32 %v77, %v78
    %v80 = vrot.slane %v79, 1
    %v81 = vmax.f32 %v79, %v80
    %82 = vst [vmem:[#allocation5 + $0x6] sm:$0x1] %v81
    %v83 = vrot.slane %v38, 4
    %v84 = vmax.f32 %v38, %v83
    %v85 = vrot.slane %v84, 2
    %v86 = vmax.f32 %v84, %v85
    %v87 = vrot.slane %v86, 1
    %v88 = vmax.f32 %v86, %v87
    %89 = vst [vmem:[#allocation5 + $0x7] sm:$0x1] %v88
    // Predicated region
    $region10: #{tpu_custom_call.1} parent=1 // pred_check
      _
    $region11: #{tpu_custom_call.1} parent=1 // pred_check_branch
      %91 = sbr.rel (0) target = $region13
    $region12: #{tpu_custom_call.1} parent=1 // pred_region
      %s93 = ssub.s32 128, 128
      %94 = vsyncadd [#allocation4], %s93
      %s96 = sshll.u32 [#allocation5], 4
      %s97 = int_to_ptr.vmem [resolvable:$true] %s96
      %99 = dma.vmem_to_hbm [thread:$0]  %s97, 128, %s1, [#allocation4]
    $region13: #{tpu_custom_call.1} parent=1 // pred_fallthru
      _
    // Predicated region
    $region14: #{tpu_custom_call.1} parent=1 // pred_check
      _
    $region15: #{tpu_custom_call.1} parent=1 // pred_check_branch
      %101 = sbr.rel (0) target = $region17
    $region16: #{tpu_custom_call.1} parent=1 // pred_region
      %102 = dma.done [#allocation4], 128
    $region17: #{tpu_custom_call.1} parent=1 // pred_fallthru
      _
    %103 = vsyncpa [#allocation3], 1
    %104 = vsyncpa [#allocation4], 1

</llo_original>
